<compile_context>
chip_gen: v6e
topology: v6e:2x2x1
jax: 0.10.0
libtpu: 0.0.40
codegen_flags: <defaults>
</compile_context>

<pallas_src>
import functools

import jax
import jax.numpy as jnp
import numpy as np
from jax.experimental import pallas as pl
from jax.experimental.pallas import tpu as pltpu

_LANE = 128       # vreg lane width: feature dims are padded to this
_SUB = 8          # sublane granularity for the node dimensions
_MAX_TILE = 512   # cap on node-dim tiles (fits VMEM comfortably on v5e/v6e/v7x)


def _round_up(x, m):
    return ((x + m - 1) // m) * m


def _pad2(x, rows, cols):
    return jnp.pad(x, ((0, rows - x.shape[0]), (0, cols - x.shape[1])))


def _project_first(fin_pad, fout_pad):
    # A @ (X @ W_l) when the projected width is no wider than the input width.
    return fout_pad <= fin_pad


# ---------------------------------------------------------------------------
# Pallas kernel: one SAGEConv layer (+ optional activation), tiled over
# (target-node tiles, source-node tiles); the source axis is the reduction.
# ---------------------------------------------------------------------------
def _sage_layer_kernel(a_ref, xs_ref, xt_ref, dinv_ref, wl_ref, wr_ref, b_ref,
                       o_ref, acc_ref, *, activation, project_first,
                       fout_valid):
    # a_ref   : [tm, tk]            bf16 raw edge-count adjacency tile
    # xs_ref  : [tk, Fin_pad]       bf16 source-node features (reduction tile k)
    # xt_ref  : [tm, Fin_pad]       bf16 target-node features (first Nt rows of x)
    # dinv_ref: [tm, 1]             f32  1/degree (mean aggregation)
    # wl_ref  : [Fin_pad, Fout_pad] bf16 (= W_l^T); wr_ref same for W_r^T
    # b_ref   : [1, Fout_pad]       f32  lin_l bias
    # o_ref   : [tm, Fout_pad]      output tile
    # acc_ref : [tm, Fout_pad | Fin_pad] f32 accumulator (VMEM scratch)
    k = pl.program_id(1)
    nk = pl.num_programs(1)

    @pl.when(k == 0)
    def _init():
        acc_ref[...] = jnp.zeros_like(acc_ref)

    if project_first:
        # acc += A_tile @ (X_tile @ W_l): fewer MXU FLOPs, smaller intermediate.
        proj = jnp.dot(xs_ref[...], wl_ref[...],
                       preferred_element_type=jnp.float32)
        acc_ref[...] += jnp.dot(a_ref[...], proj.astype(xs_ref.dtype),
                                preferred_element_type=jnp.float32)
    else:
        # acc += A_tile @ X_tile; project after the reduction finishes.
        acc_ref[...] += jnp.dot(a_ref[...], xs_ref[...],
                                preferred_element_type=jnp.float32)

    @pl.when(k == nk - 1)
    def _finalize():
        if project_first:
            out = acc_ref[...] * dinv_ref[...]                 # mean aggregation
        else:
            agg = (acc_ref[...] * dinv_ref[...]).astype(xs_ref.dtype)
            out = jnp.dot(agg, wl_ref[...], preferred_element_type=jnp.float32)
        # root/self term (lin_r, no bias) + lin_l bias
        out = out + jnp.dot(xt_ref[...], wr_ref[...],
                            preferred_element_type=jnp.float32)
        out = out + b_ref[...]

        if activation == "relu":
            out = jnp.maximum(out, 0.0)
        elif activation == "log_softmax":
            # Mask the lane padding so it does not pollute the softmax; the
            # exp/log land on the EUP slot while the MXU drains.
            lane = jax.lax.broadcasted_iota(jnp.int32, out.shape, 1)
            out = jnp.where(lane < fout_valid, out, jnp.float32(-1e30))
            m = jnp.max(out, axis=-1, keepdims=True)
            s = out - m
            lse = jnp.log(jnp.sum(jnp.exp(s), axis=-1, keepdims=True))
            out = s - lse
        o_ref[...] = out.astype(o_ref.dtype)


def sage_layer(a_cnt, deg_inv, x, n_tgt, w_l, w_r, b_l, *, activation,
               out_dtype=jnp.float32):
    """One SAGEConv layer as a tiled Pallas call.

    a_cnt  : [Nt, Ns] f32 raw edge counts (unnormalized adjacency)
    deg_inv: [Nt]     f32 1/degree (degree clamped to >= 1)
    x      : [Ns, Fin] source features; targets are rows x[:Nt]
    w_l/w_r: [Fin, Fout] (transposed weights), b_l: [Fout]
    """
    n_src, fin = x.shape
    fout = w_l.shape[1]
    assert a_cnt.shape == (n_tgt, n_src)
    # PyG NeighborSampler convention: target nodes are the first Nt source nodes.
    assert n_tgt <= n_src

    fin_pad = _round_up(fin, _LANE)
    fout_pad = _round_up(fout, _LANE)
    tm = min(_MAX_TILE, _round_up(n_tgt, _SUB))
    tk = min(_MAX_TILE, _round_up(n_src, _SUB))
    nt_pad = _round_up(n_tgt, tm)
    ns_pad = _round_up(n_src, tk)
    nrows = max(ns_pad, nt_pad)   # x is viewed both as sources and as targets

    project_first = _project_first(fin_pad, fout_pad)
    acc_cols = fout_pad if project_first else fin_pad

    bf = jnp.bfloat16
    a_p = _pad2(a_cnt, nt_pad, ns_pad).astype(bf)
    x_p = _pad2(x.astype(bf), nrows, fin_pad)
    dinv_p = _pad2(deg_inv.reshape(-1, 1).astype(jnp.float32), nt_pad, 1)
    wl_p = _pad2(w_l.astype(bf), fin_pad, fout_pad)
    wr_p = _pad2(w_r.astype(bf), fin_pad, fout_pad)
    b_p = _pad2(b_l.reshape(1, -1).astype(jnp.float32), 1, fout_pad)

    grid = (nt_pad // tm, ns_pad // tk)

    if project_first:
        flops = 2 * (grid[0] * ns_pad * fin_pad * fout_pad
                     + nt_pad * ns_pad * fout_pad
                     + nt_pad * fin_pad * fout_pad)
    else:
        flops = 2 * (nt_pad * ns_pad * fin_pad
                     + 2 * nt_pad * fin_pad * fout_pad)
    transcendentals = nt_pad * fout_pad if activation == "log_softmax" else 0
    bytes_accessed = int(a_p.size * 2 + x_p.size * 2 + nt_pad * fin_pad * 2
                         + dinv_p.size * 4 + wl_p.size * 2 + wr_p.size * 2
                         + b_p.size * 4
                         + nt_pad * fout_pad * np.dtype(out_dtype).itemsize)

    kern = functools.partial(_sage_layer_kernel, activation=activation,
                             project_first=project_first, fout_valid=fout)

    out_padded = pl.pallas_call(
        kern,
        out_shape=jax.ShapeDtypeStruct((nt_pad, fout_pad), out_dtype),
        grid=grid,
        in_specs=[
            pl.BlockSpec((tm, tk), lambda i, k: (i, k)),           # A tile
            pl.BlockSpec((tk, fin_pad), lambda i, k: (k, 0)),      # x (source view)
            pl.BlockSpec((tm, fin_pad), lambda i, k: (i, 0)),      # x (target view)
            pl.BlockSpec((tm, 1), lambda i, k: (i, 0)),            # 1/deg
            pl.BlockSpec((fin_pad, fout_pad), lambda i, k: (0, 0)),  # W_l^T
            pl.BlockSpec((fin_pad, fout_pad), lambda i, k: (0, 0)),  # W_r^T
            pl.BlockSpec((1, fout_pad), lambda i, k: (0, 0)),        # bias
        ],
        out_specs=pl.BlockSpec((tm, fout_pad), lambda i, k: (i, 0)),
        scratch_shapes=[pltpu.VMEM((tm, acc_cols), jnp.float32)],
        compiler_params=pltpu.CompilerParams(
            dimension_semantics=("parallel", "arbitrary"),
            vmem_limit_bytes=32 * 1024 * 1024),
        cost_estimate=pl.CostEstimate(flops=flops,
                                      transcendentals=transcendentals,
                                      bytes_accessed=bytes_accessed),
    )(a_p, x_p, x_p, dinv_p, wl_p, wr_p, b_p)
    return out_padded[:n_tgt, :fout]


# ---------------------------------------------------------------------------
# Glue: raw dense adjacency + inverse degree from edge_index (scatter in JAX).
# ---------------------------------------------------------------------------
def build_adjacency(edge_index, n_src, n_tgt):
    # edge_index: int32 [2, E], row 0 = source ids, row 1 = target ids.
    src = edge_index[0]
    dst = edge_index[1]
    a_cnt = jnp.zeros((n_tgt, n_src), jnp.float32).at[dst, src].add(1.0)
    deg = jnp.sum(a_cnt, axis=1)
    deg_inv = 1.0 / jnp.maximum(deg, 1.0)   # zero in-degree rows aggregate to 0
    return a_cnt, deg_inv


# ---------------------------------------------------------------------------
# SAGE model (eval-mode forward)
# ---------------------------------------------------------------------------
def init_sage_params(key, in_channels, hidden_channels, out_channels,
                     num_layers=2):
    dims = ([in_channels] + [hidden_channels] * (num_layers - 1),
            [hidden_channels] * (num_layers - 1) + [out_channels])
    params = []
    for fin, fout in zip(*dims):
        k1, k2, key = jax.random.split(key, 3)
        scale = 1.0 / np.sqrt(fin)
        w_l = jax.random.uniform(k1, (fin, fout), jnp.float32, -scale, scale)
        w_r = jax.random.uniform(k2, (fin, fout), jnp.float32, -scale, scale)
        b_l = jnp.zeros((fout,), jnp.float32)   # lin_l has bias, lin_r does not
        params.append((w_l, w_r, b_l))
    return params


def sage_forward(params, x, adjs):
    """adjs: list of (edge_index, n_src, n_tgt) per layer (PyG NeighborSampler)."""
    num_layers = len(params)
    for i, (edge_index, n_src, n_tgt) in enumerate(adjs):
        a_cnt, deg_inv = build_adjacency(edge_index, n_src, n_tgt)
        w_l, w_r, b_l = params[i]
        last = i == num_layers - 1
        x = sage_layer(a_cnt, deg_inv, x, n_tgt, w_l, w_r, b_l,
                       activation="log_softmax" if last else "relu",
                       out_dtype=jnp.float32 if last else jnp.bfloat16)
        # F.dropout(p=0.5, training=False) is identity in eval mode.
    return x


# ---------------------------------------------------------------------------
# Pure-JAX references.
#   * mirror: same bf16 casts / matmul order as the kernel -> tight tolerance
#     (exact match of the math when the source axis fits in one tile, as here).
#   * f32:    full-precision math -> loose tolerance sanity check.
# ---------------------------------------------------------------------------
def sage_forward_ref_mirror(params, x, adjs):
    num_layers = len(params)
    bf = jnp.bfloat16
    for i, (edge_index, n_src, n_tgt) in enumerate(adjs):
        a_cnt, deg_inv = build_adjacency(edge_index, n_src, n_tgt)
        w_l, w_r, b_l = params[i]
        fin, fout = w_l.shape
        a = a_cnt.astype(bf)
        xs = x.astype(bf)
        xt = xs[:n_tgt]
        wl = w_l.astype(bf)
        wr = w_r.astype(bf)
        if _project_first(_round_up(fin, _LANE), _round_up(fout, _LANE)):
            proj = jnp.dot(xs, wl, preferred_element_type=jnp.float32)
            out = jnp.dot(a, proj.astype(bf), preferred_element_type=jnp.float32)
            out = out * deg_inv[:, None]
        else:
            agg = jnp.dot(a, xs, preferred_element_type=jnp.float32)
            agg = agg * deg_inv[:, None]
            out = jnp.dot(agg.astype(bf), wl, preferred_element_type=jnp.float32)
        out = out + jnp.dot(xt, wr, preferred_element_type=jnp.float32)
        out = out + b_l[None, :]
        if i != num_layers - 1:
            out = jnp.maximum(out, 0.0).astype(bf)
        else:
            out = jax.nn.log_softmax(out, axis=-1)
        x = out
    return x


def sage_forward_ref_f32(params, x, adjs):
    num_layers = len(params)
    x = x.astype(jnp.float32)
    for i, (edge_index, n_src, n_tgt) in enumerate(adjs):
        a_cnt, deg_inv = build_adjacency(edge_index, n_src, n_tgt)
        w_l, w_r, b_l = params[i]
        a_norm = a_cnt * deg_inv[:, None]
        out = a_norm @ x @ w_l + x[:n_tgt] @ w_r + b_l[None, :]
        if i != num_layers - 1:
            out = jnp.maximum(out, 0.0)
        else:
            out = jax.nn.log_softmax(out, axis=-1)
        x = out
    return x


if __name__ == "__main__":
    key = jax.random.PRNGKey(0)
    in_channels, hidden_channels, out_channels, num_layers = 32, 32, 16, 2

    # Node counts per hop (NeighborSampler-style bipartite sizes).
    n_src0, n_tgt0 = 64, 32      # layer 0: 64 source nodes -> 32 target nodes
    n_src1, n_tgt1 = 32, 16      # layer 1: 32 source nodes -> 16 target nodes
    e0, e1 = 128, 64

    kx, ke0a, ke0b, ke1a, ke1b, kp = jax.random.split(key, 6)
    x = jax.random.normal(kx, (n_src0, in_channels), jnp.float32)

    edge_index0 = jnp.stack([
        jax.random.randint(ke0a, (e0,), 0, n_src0, jnp.int32),
        jax.random.randint(ke0b, (e0,), 0, n_tgt0, jnp.int32)])
    edge_index1 = jnp.stack([
        jax.random.randint(ke1a, (e1,), 0, n_src1, jnp.int32),
        jax.random.randint(ke1b, (e1,), 0, n_tgt1, jnp.int32)])
    adjs = [(edge_index0, n_src0, n_tgt0), (edge_index1, n_src1, n_tgt1)]

    params = init_sage_params(kp, in_channels, hidden_channels, out_channels,
                              num_layers)

    out = jax.block_until_ready(sage_forward(params, x, adjs))
    assert out.shape == (n_tgt1, out_channels)

    ref_mirror = sage_forward_ref_mirror(params, x, adjs)
    np.testing.assert_allclose(np.asarray(out), np.asarray(ref_mirror),
                               rtol=1e-2, atol=1e-2)
    ref_f32 = sage_forward_ref_f32(params, x, adjs)
    np.testing.assert_allclose(np.asarray(out), np.asarray(ref_f32),
                               rtol=5e-2, atol=5e-2)
    print("KERNEL_OK")
</pallas_src>

<mosaic_0001>
module attributes {stable_mosaic.version = 11 : i64} {
  func.func @_sage_layer_kernel(%arg0: i32, %arg1: i32, %arg2: memref<32x64xbf16, #tpu.memory_space<vmem>>, %arg3: memref<64x128xbf16, #tpu.memory_space<vmem>>, %arg4: memref<32x128xbf16, #tpu.memory_space<vmem>>, %arg5: memref<32x1xf32, #tpu.memory_space<vmem>>, %arg6: memref<128x128xbf16, #tpu.memory_space<vmem>>, %arg7: memref<128x128xbf16, #tpu.memory_space<vmem>>, %arg8: memref<1x128xf32, #tpu.memory_space<vmem>>, %arg9: memref<32x128xbf16, #tpu.memory_space<vmem>>, %arg10: memref<32x128xf32, #tpu.memory_space<vmem>>) attributes {dimension_semantics = [#tpu.dimension_semantics<parallel>, #tpu.dimension_semantics<arbitrary>], iteration_bounds = array<i64: 1, 1>, scalar_prefetch = 0 : i64, scratch_operands = 1 : i64, tpu.core_type = #tpu.core_type<tc>, window_params = [{transform_indices = @transform_0, window_bounds = array<i64: 32, 64>}, {transform_indices = @transform_1, window_bounds = array<i64: 64, 128>}, {transform_indices = @transform_2, window_bounds = array<i64: 32, 128>}, {transform_indices = @transform_3, window_bounds = array<i64: 32, 1>}, {pipeline_mode = #tpu.pipeline_mode<synchronous>, transform_indices = @transform_4, window_bounds = array<i64: 128, 128>}, {pipeline_mode = #tpu.pipeline_mode<synchronous>, transform_indices = @transform_5, window_bounds = array<i64: 128, 128>}, {pipeline_mode = #tpu.pipeline_mode<synchronous>, transform_indices = @transform_6, window_bounds = array<i64: 1, 128>}, {transform_indices = @transform_7, window_bounds = array<i64: 32, 128>}]} {
    %c0_i32 = arith.constant 0 : i32
    %0 = arith.cmpi eq, %arg1, %c0_i32 : i32
    %1 = arith.extui %0 : i1 to i32
    %c0_i32_0 = arith.constant 0 : i32
    %2 = arith.cmpi ne, %1, %c0_i32_0 : i32
    scf.if %2 {
      %cst_13 = arith.constant 0.000000e+00 : f32
      %15 = vector.broadcast %cst_13 : f32 to vector<32x128xf32>
      %c0_14 = arith.constant 0 : index
      %c0_15 = arith.constant 0 : index
      %16 = vector.load %arg10[%c0_14, %c0_15] : memref<32x128xf32, #tpu.memory_space<vmem>>, vector<32x128xf32>
      tpu.vector_store %arg10[%c0_14, %c0_15], %15 {strides = array<i32>} : memref<32x128xf32, #tpu.memory_space<vmem>>, vector<32x128xf32>,
    } else {
    }
    %c0 = arith.constant 0 : index
    %c0_1 = arith.constant 0 : index
    %3 = vector.load %arg3[%c0, %c0_1] : memref<64x128xbf16, #tpu.memory_space<vmem>>, vector<64x128xbf16>
    %c0_2 = arith.constant 0 : index
    %c0_3 = arith.constant 0 : index
    %4 = vector.load %arg6[%c0_2, %c0_3] : memref<128x128xbf16, #tpu.memory_space<vmem>>, vector<128x128xbf16>
    %cst = arith.constant dense<0.000000e+00> : vector<64x128xf32>
    %5 = tpu.matmul %3, %4, %cst {dimension_numbers = #tpu.dot_dimension_numbers<[1], [0], [0], [1], [0, 0, 1, 1], [], []>} : vector<64x128xbf16>, vector<128x128xbf16>, vector<64x128xf32> -> vector<64x128xf32>
    %c0_4 = arith.constant 0 : index
    %c0_5 = arith.constant 0 : index
    %6 = vector.load %arg10[%c0_4, %c0_5] : memref<32x128xf32, #tpu.memory_space<vmem>>, vector<32x128xf32>
    %c0_6 = arith.constant 0 : index
    %c0_7 = arith.constant 0 : index
    %7 = vector.load %arg2[%c0_6, %c0_7] : memref<32x64xbf16, #tpu.memory_space<vmem>>, vector<32x64xbf16>
    %8 = arith.truncf %5 : vector<64x128xf32> to vector<64x128xbf16>
    %cst_8 = arith.constant dense<0.000000e+00> : vector<32x128xf32>
    %9 = tpu.matmul %7, %8, %cst_8 {dimension_numbers = #tpu.dot_dimension_numbers<[1], [0], [0], [1], [0, 0, 1, 1], [], []>} : vector<32x64xbf16>, vector<64x128xbf16>, vector<32x128xf32> -> vector<32x128xf32>
    %10 = arith.addf %6, %9 : vector<32x128xf32>
    %c0_9 = arith.constant 0 : index
    %c0_10 = arith.constant 0 : index
    %11 = vector.load %arg10[%c0_9, %c0_10] : memref<32x128xf32, #tpu.memory_space<vmem>>, vector<32x128xf32>
    tpu.vector_store %arg10[%c0_9, %c0_10], %10 {strides = array<i32>} : memref<32x128xf32, #tpu.memory_space<vmem>>, vector<32x128xf32>,
    %c0_i32_11 = arith.constant 0 : i32
    %12 = arith.cmpi eq, %arg1, %c0_i32_11 : i32
    %13 = arith.extui %12 : i1 to i32
    %c0_i32_12 = arith.constant 0 : i32
    %14 = arith.cmpi ne, %13, %c0_i32_12 : i32
    scf.if %14 {
      %c0_13 = arith.constant 0 : index
      %c0_14 = arith.constant 0 : index
      %15 = vector.load %arg10[%c0_13, %c0_14] : memref<32x128xf32, #tpu.memory_space<vmem>>, vector<32x128xf32>
      %c0_15 = arith.constant 0 : index
      %c0_16 = arith.constant 0 : index
      %16 = vector.load %arg5[%c0_15, %c0_16] : memref<32x1xf32, #tpu.memory_space<vmem>>, vector<32x1xf32>
      %17 = vector.broadcast %16 : vector<32x1xf32> to vector<32x128xf32>
      %18 = arith.mulf %15, %17 : vector<32x128xf32>
      %c0_17 = arith.constant 0 : index
      %c0_18 = arith.constant 0 : index
      %19 = vector.load %arg4[%c0_17, %c0_18] : memref<32x128xbf16, #tpu.memory_space<vmem>>, vector<32x128xbf16>
      %c0_19 = arith.constant 0 : index
      %c0_20 = arith.constant 0 : index
      %20 = vector.load %arg7[%c0_19, %c0_20] : memref<128x128xbf16, #tpu.memory_space<vmem>>, vector<128x128xbf16>
      %cst_21 = arith.constant dense<0.000000e+00> : vector<32x128xf32>
      %21 = tpu.matmul %19, %20, %cst_21 {dimension_numbers = #tpu.dot_dimension_numbers<[1], [0], [0], [1], [0, 0, 1, 1], [], []>} : vector<32x128xbf16>, vector<128x128xbf16>, vector<32x128xf32> -> vector<32x128xf32>
      %22 = arith.addf %18, %21 : vector<32x128xf32>
      %c0_22 = arith.constant 0 : index
      %c0_23 = arith.constant 0 : index
      %23 = vector.load %arg8[%c0_22, %c0_23] : memref<1x128xf32, #tpu.memory_space<vmem>>, vector<1x128xf32>
      %24 = vector.broadcast %23 : vector<1x128xf32> to vector<32x128xf32>
      %25 = arith.addf %22, %24 : vector<32x128xf32>
      %cst_24 = arith.constant 0.000000e+00 : f32
      %26 = vector.broadcast %cst_24 : f32 to vector<32x128xf32>
      %27 = arith.maximumf %25, %26 : vector<32x128xf32>
      %28 = arith.truncf %27 : vector<32x128xf32> to vector<32x128xbf16>
      %c0_25 = arith.constant 0 : index
      %c0_26 = arith.constant 0 : index
      %29 = vector.load %arg9[%c0_25, %c0_26] : memref<32x128xbf16, #tpu.memory_space<vmem>>, vector<32x128xbf16>
      tpu.vector_store %arg9[%c0_25, %c0_26], %28 {strides = array<i32>} : memref<32x128xbf16, #tpu.memory_space<vmem>>, vector<32x128xbf16>,
    } else {
    }
    return
  }
  func.func @transform_0(%arg0: i32, %arg1: i32) -> (i32, i32) {
    %c0_i32 = arith.constant 0 : i32
    return %arg0, %arg1 : i32, i32
  }
  func.func @transform_1(%arg0: i32, %arg1: i32) -> (i32, i32) {
    %c0_i32 = arith.constant 0 : i32
    %c0_i32_0 = arith.constant 0 : i32
    return %arg1, %c0_i32 : i32, i32
  }
  func.func @transform_2(%arg0: i32, %arg1: i32) -> (i32, i32) {
    %c0_i32 = arith.constant 0 : i32
    %c0_i32_0 = arith.constant 0 : i32
    return %arg0, %c0_i32 : i32, i32
  }
  func.func @transform_3(%arg0: i32, %arg1: i32) -> (i32, i32) {
    %c0_i32 = arith.constant 0 : i32
    %c0_i32_0 = arith.constant 0 : i32
    return %arg0, %c0_i32 : i32, i32
  }
  func.func @transform_4(%arg0: i32, %arg1: i32) -> (i32, i32) {
    %c0_i32 = arith.constant 0 : i32
    %c0_i32_0 = arith.constant 0 : i32
    %c0_i32_1 = arith.constant 0 : i32
    return %c0_i32, %c0_i32_0 : i32, i32
  }
  func.func @transform_5(%arg0: i32, %arg1: i32) -> (i32, i32) {
    %c0_i32 = arith.constant 0 : i32
    %c0_i32_0 = arith.constant 0 : i32
    %c0_i32_1 = arith.constant 0 : i32
    return %c0_i32, %c0_i32_0 : i32, i32
  }
  func.func @transform_6(%arg0: i32, %arg1: i32) -> (i32, i32) {
    %c0_i32 = arith.constant 0 : i32
    %c0_i32_0 = arith.constant 0 : i32
    %c0_i32_1 = arith.constant 0 : i32
    return %c0_i32, %c0_i32_0 : i32, i32
  }
  func.func @transform_7(%arg0: i32, %arg1: i32) -> (i32, i32) {
    %c0_i32 = arith.constant 0 : i32
    %c0_i32_0 = arith.constant 0 : i32
    return %arg0, %c0_i32 : i32, i32
  }
}

</mosaic_0001>

<llo_original>
// kernel: tpu_custom_call.1
$region0: #{tpu_custom_call.1}
  #allocation0 [shape = 'u32[]', space=smem, size = 0x4, offset = 0x4, fixed_abs, tag = 'smem constant byte address 0x4 - core index']
  #allocation1 [shape = 'u32[144,128]{1,0:T(1,128)}', space=vmem, size = 0x12000, scoped, tag = 'internal scratch']
  #allocation2 [shape = 'f32[32,128]{1,0:T(8,128)}', space=vmem, size = 0x4000, scoped, tag = 'scratch operand']
  %s0 = inlined_call_operand.hbm [shape: bf16[32,64], index: 0, kind: input, shape index: {}]
  %s1 = inlined_call_operand.vmem [shape: bf16[64,128], index: 1, kind: input, shape index: {}]
  %s2 = inlined_call_operand.hbm [shape: bf16[64,128], index: 2, kind: input, shape index: {}]
  %s3 = inlined_call_operand.vmem [shape: f32[32,1], index: 3, kind: input, shape index: {}]
  %s4 = inlined_call_operand.hbm [shape: bf16[128,128], index: 4, kind: input, shape index: {}]
  %s5 = inlined_call_operand.hbm [shape: bf16[128,128], index: 5, kind: input, shape index: {}]
  %s6 = inlined_call_operand.vmem [shape: f32[1,128], index: 6, kind: input, shape index: {}]
  %s7 = inlined_call_operand.hbm [shape: bf16[32,128], index: 7, kind: output, shape index: {}]
  %s8 = sld [smem:[#allocation0]]
  $region62: #{tpu_custom_call.1} parent=0
    _
  %s10 = ssub.s32 1, %s8
  %s11 = scalar_select 0, %s10, %s8
  $region1: #{tpu_custom_call.1} parent=0
    #allocation3 [shape = 'u8[8192]{0}', space=vmem, size = 0x2000, scoped, tag = 'input window, operand 0, single buffered']
    #allocation4 [shape = 's32[1]{0}', space=sflag, size = 0x4, scoped, tag = 'scoped memory for tpu_custom_call.1']
    #allocation5 [shape = 's32[1]{0}', space=sflag, size = 0x4, scoped, tag = 'scoped memory for tpu_custom_call.1']
    #allocation6 [shape = 'u8[8192]{0}', space=vmem, size = 0x2000, scoped, tag = 'input window, operand 2, single buffered']
    #allocation7 [shape = 's32[1]{0}', space=sflag, size = 0x4, scoped, tag = 'scoped memory for tpu_custom_call.1']
    #allocation8 [shape = 'u8[32768]{0}', space=vmem, size = 0x8000, scoped, tag = 'input window, operand 4, single buffered']
    #allocation9 [shape = 'u8[32768]{0}', space=vmem, size = 0x8000, scoped, tag = 'input window, operand 5, single buffered']
    #allocation10 [shape = 's32[1]{0}', space=sflag, size = 0x4, scoped, tag = 'scoped memory for tpu_custom_call.1']
    #allocation11 [shape = 'u8[8192]{0}', space=vmem, size = 0x2000, scoped, tag = 'output window, operand 0, single buffered']
    %12 = vsyncpa [#allocation4], 0
    %13 = vsyncpa [#allocation7], 0
    %14 = vsyncpa [#allocation10], 0
    %15 = vsyncpa [#allocation5], 0
    // Predicated region
    $region2: #{tpu_custom_call.1} parent=1 // pred_check
      _
    $region3: #{tpu_custom_call.1} parent=1 // pred_check_branch
      %17 = sbr.rel (0) target = $region5
    $region4: #{tpu_custom_call.1} parent=1 // pred_region
      %s19 = ssub.s32 256, 256
      %20 = vsyncadd [#allocation4], %s19
      %s21 = sshll.u32 [#allocation3], 4
      %s22 = int_to_ptr.vmem [resolvable:$true] %s21
      %27 = dma.hbm_to_vmem [thread:$0]  %s0, 256, %s22, [#allocation4], 64, 64, 4
    $region5: #{tpu_custom_call.1} parent=1 // pred_fallthru
      _
    // Predicated region
    $region6: #{tpu_custom_call.1} parent=1 // pred_check
      _
    $region7: #{tpu_custom_call.1} parent=1 // pred_check_branch
      %29 = sbr.rel (0) target = $region9
    $region8: #{tpu_custom_call.1} parent=1 // pred_region
      _
    $region9: #{tpu_custom_call.1} parent=1 // pred_fallthru
      _
    // Predicated region
    $region10: #{tpu_custom_call.1} parent=1 // pred_check
      _
    $region11: #{tpu_custom_call.1} parent=1 // pred_check_branch
      %31 = sbr.rel (0) target = $region13
    $region12: #{tpu_custom_call.1} parent=1 // pred_region
      %s33 = ssub.s32 256, 256
      %34 = vsyncadd [#allocation7], %s33
      %s35 = sshll.u32 [#allocation6], 4
      %s36 = int_to_ptr.vmem [resolvable:$true] %s35
      %41 = dma.hbm_to_vmem [thread:$0]  %s2, 256, %s36, [#allocation7], 64, 64, 4
    $region13: #{tpu_custom_call.1} parent=1 // pred_fallthru
      _
    // Predicated region
    $region14: #{tpu_custom_call.1} parent=1 // pred_check
      _
    $region15: #{tpu_custom_call.1} parent=1 // pred_check_branch
      %43 = sbr.rel (0) target = $region17
    $region16: #{tpu_custom_call.1} parent=1 // pred_region
      _
    $region17: #{tpu_custom_call.1} parent=1 // pred_fallthru
      _
    // Predicated region
    $region18: #{tpu_custom_call.1} parent=1 // pred_check
      _
    $region19: #{tpu_custom_call.1} parent=1 // pred_check_branch
      %45 = sbr.rel (0) target = $region21
    $region20: #{tpu_custom_call.1} parent=1 // pred_region
      %s47 = ssub.s32 1024, 1024
      %48 = vsyncadd [#allocation7], %s47
      %s49 = sshll.u32 [#allocation8], 4
      %s50 = int_to_ptr.vmem [resolvable:$true] %s49
      %55 = dma.hbm_to_vmem [thread:$0]  %s4, 1024, %s50, [#allocation7], 64, 64, 4
    $region21: #{tpu_custom_call.1} parent=1 // pred_fallthru
      _
    // Predicated region
    $region22: #{tpu_custom_call.1} parent=1 // pred_check
      _
    $region23: #{tpu_custom_call.1} parent=1 // pred_check_branch
      %57 = sbr.rel (0) target = $region25
    $region24: #{tpu_custom_call.1} parent=1 // pred_region
      %s59 = ssub.s32 1024, 1024
      %60 = vsyncadd [#allocation10], %s59
      %s61 = sshll.u32 [#allocation9], 4
      %s62 = int_to_ptr.vmem [resolvable:$true] %s61
      %67 = dma.hbm_to_vmem [thread:$0]  %s5, 1024, %s62, [#allocation10], 64, 64, 4
    $region25: #{tpu_custom_call.1} parent=1 // pred_fallthru
      _
    // Predicated region
    $region26: #{tpu_custom_call.1} parent=1 // pred_check
      _
    $region27: #{tpu_custom_call.1} parent=1 // pred_check_branch
      %69 = sbr.rel (0) target = $region29
    $region28: #{tpu_custom_call.1} parent=1 // pred_region
      _
    $region29: #{tpu_custom_call.1} parent=1 // pred_fallthru
      _
    // Predicated region
    $region30: #{tpu_custom_call.1} parent=1 // pred_check
      _
    $region31: #{tpu_custom_call.1} parent=1 // pred_check_branch
      %71 = sbr.rel (0) target = $region33
    $region32: #{tpu_custom_call.1} parent=1 // pred_region
      %72 = dma.done [#allocation4], 256
    $region33: #{tpu_custom_call.1} parent=1 // pred_fallthru
      _
    // Predicated region
    $region34: #{tpu_custom_call.1} parent=1 // pred_check
      _
    $region35: #{tpu_custom_call.1} parent=1 // pred_check_branch
      %74 = sbr.rel (0) target = $region37
    $region36: #{tpu_custom_call.1} parent=1 // pred_region
      %75 = dma.done [#allocation7], 256
    $region37: #{tpu_custom_call.1} parent=1 // pred_fallthru
      _
    // Predicated region
    $region38: #{tpu_custom_call.1} parent=1 // pred_check
      _
    $region39: #{tpu_custom_call.1} parent=1 // pred_check_branch
      %77 = sbr.rel (0) target = $region41
    $region40: #{tpu_custom_call.1} parent=1 // pred_region
      %78 = dma.done [#allocation7], 1024
    $region41: #{tpu_custom_call.1} parent=1 // pred_fallthru
      _
    // Predicated region
    $region42: #{tpu_custom_call.1} parent=1 // pred_check
      _
    $region43: #{tpu_custom_call.1} parent=1 // pred_check_branch
      %80 = sbr.rel (0) target = $region45
    $region44: #{tpu_custom_call.1} parent=1 // pred_region
      %81 = dma.done [#allocation10], 1024
    $region45: #{tpu_custom_call.1} parent=1 // pred_fallthru
      _
    %p83 = scmp.eq.s32.totalorder 0, 0
    // Predicated region
    $region46: #{tpu_custom_call.1} parent=1 // pred_check
      %p84 = pneg %p83
    $region47: #{tpu_custom_call.1} parent=1 // pred_check_branch
      %86 = sbr.rel (%p84) target = $region49
    $region48: #{tpu_custom_call.1} parent=1 // pred_region
      %87 = vst [vmem:[#allocation2] sm:$0xff] 0.0
      %88 = vst [vmem:[#allocation2 + $0x8] sm:$0xff] 0.0
      %89 = vst [vmem:[#allocation2 + $0x10] sm:$0xff] 0.0
      %90 = vst [vmem:[#allocation2 + $0x18] sm:$0xff] 0.0
    $region49: #{tpu_custom_call.1} parent=1 // pred_fallthru
      _
    %v91 = vld [vmem:[%s1] sm:$0xf]
    %v92 = vld [vmem:[%s1 + $0x4] sm:$0xf]
    %v93 = vld [vmem:[%s1 + $0x8] sm:$0xf]
    %v94 = vld [vmem:[%s1 + $0xc] sm:$0xf]
    %v95 = vld [vmem:[%s1 + $0x10] sm:$0xf]
    %v96 = vld [vmem:[%s1 + $0x14] sm:$0xf]
    %v97 = vld [vmem:[%s1 + $0x18] sm:$0xf]
    %v98 = vld [vmem:[%s1 + $0x1c] sm:$0xf]
    %v99 = vld [vmem:[#allocation8] sm:$0xf]
    %v100 = vld [vmem:[#allocation8 + $0x4] sm:$0xf]
    %v101 = vld [vmem:[#allocation8 + $0x8] sm:$0xf]
    %v102 = vld [vmem:[#allocation8 + $0xc] sm:$0xf]
    %v103 = vld [vmem:[#allocation8 + $0x10] sm:$0xf]
    %v104 = vld [vmem:[#allocation8 + $0x14] sm:$0xf]
    %v105 = vld [vmem:[#allocation8 + $0x18] sm:$0xf]
    %v106 = vld [vmem:[#allocation8 + $0x1c] sm:$0xf]
    %v107 = vld [vmem:[#allocation8 + $0x20] sm:$0xf]
    %v108 = vld [vmem:[#allocation8 + $0x24] sm:$0xf]
    %v109 = vld [vmem:[#allocation8 + $0x28] sm:$0xf]
    %v110 = vld [vmem:[#allocation8 + $0x2c] sm:$0xf]
    %v111 = vld [vmem:[#allocation8 + $0x30] sm:$0xf]
    %v112 = vld [vmem:[#allocation8 + $0x34] sm:$0xf]
    %v113 = vld [vmem:[#allocation8 + $0x38] sm:$0xf]
    %v114 = vld [vmem:[#allocation8 + $0x3c] sm:$0xf]
    %v123 = vunpack.c.l.b16 %v91
    %v124 = vunpack.c.l.b16 %v92
    %v125 = vunpack.c.l.b16 %v93
    %v126 = vunpack.c.l.b16 %v94
    %v127 = vunpack.c.l.b16 %v95
    %v128 = vunpack.c.l.b16 %v96
    %v129 = vunpack.c.l.b16 %v97
    %v130 = vunpack.c.l.b16 %v98
    %v131 = vpack.c.b16 %v124, %v123
    %v132 = vpack.c.b16 %v126, %v125
    %v133 = vpack.c.b16 %v128, %v127
    %v134 = vpack.c.b16 %v130, %v129
    %v155 = vunpack.c.l.b16 %v99
    %v156 = vunpack.c.l.b16 %v100
    %v157 = vunpack.c.l.b16 %v101
    %v158 = vunpack.c.l.b16 %v102
    %v159 = vunpack.c.l.b16 %v103
    %v160 = vunpack.c.l.b16 %v104
    %v161 = vunpack.c.l.b16 %v105
    %v162 = vunpack.c.l.b16 %v106
    %v163 = vunpack.c.l.b16 %v107
    %v164 = vunpack.c.l.b16 %v108
    %v165 = vunpack.c.l.b16 %v109
    %v166 = vunpack.c.l.b16 %v110
    %v167 = vunpack.c.l.b16 %v111
    %v168 = vunpack.c.l.b16 %v112
    %v169 = vunpack.c.l.b16 %v113
    %v170 = vunpack.c.l.b16 %v114
    %v171 = vpack.c.b16 %v156, %v155
    %v172 = vpack.c.b16 %v158, %v157
    %v173 = vpack.c.b16 %v160, %v159
    %v174 = vpack.c.b16 %v162, %v161
    %v175 = vpack.c.b16 %v164, %v163
    %v176 = vpack.c.b16 %v166, %v165
    %v177 = vpack.c.b16 %v168, %v167
    %v178 = vpack.c.b16 %v170, %v169
    %187 = vmatprep.subr.bf16.mxu0 0
    %188 = vmatpush1.bf16.msra.mxu0 %v178
    %189 = vmatprep.subr.bf16.mxu0 0
    %190 = vmatpush1.bf16.msra.mxu0 %v177
    %191 = vmatprep.subr.bf16.mxu0 0
    %192 = vmatpush1.bf16.msra.mxu0 %v176
    %193 = vmatprep.subr.bf16.mxu0 0
    %194 = vmatpush1.bf16.msra.mxu0 %v175
    %195 = vmatprep.subr.bf16.mxu0 0
    %196 = vmatpush1.bf16.msra.mxu0 %v174
    %197 = vmatprep.subr.bf16.mxu0 0
    %198 = vmatpush1.bf16.msra.mxu0 %v173
    %199 = vmatprep.subr.bf16.mxu0 0
    %200 = vmatpush1.bf16.msra.mxu0 %v172
    %201 = vmatprep.subr.bf16.mxu0 0
    %202 = vmatpush1.bf16.msra.mxu0 %v171
    %203 = vmatprep.subr.bf16.mxu0 0
    %204 = vmatpush2.bf16.msra.mxu0 0
    %205 = vmatprep.subr.bf16.mxu0 0
    %206 = vmatpush2.bf16.msra.mxu0 0
    %207 = vmatprep.subr.bf16.mxu0 0
    %208 = vmatpush2.bf16.msra.mxu0 0
    %209 = vmatprep.subr.bf16.mxu0 0
    %210 = vmatpush2.bf16.msra.mxu0 0
    %211 = vmatprep.subr.bf16.mxu0 0
    %212 = vmatpush2.bf16.msra.mxu0 0
    %213 = vmatprep.subr.bf16.mxu0 0
    %214 = vmatpush2.bf16.msra.mxu0 0
    %215 = vmatprep.subr.bf16.mxu0 0
    %216 = vmatpush2.bf16.msra.mxu0 0
    %217 = vmatprep.subr.bf16.mxu0 0
    %218 = vmatpush2.bf16.msra.mxu0 0
    %219 = vmatprep.mubr.bf16.mxu0 0
    %220 = vmatmul.mubr.bf16.gmra.mxu0 %v131
    %v221 = vpop.f32.mrf.mxu0
    %v222 = vadd.f32 0.0, %v221
    %v223 = vpop.f32.mrf.mxu0
    %v224 = vpop.f32.mrf.mxu0
    %v225 = vadd.f32 0.0, %v224
    %v226 = vpop.f32.mrf.mxu0
    %227 = vmatprep.mubr.bf16.mxu0 0
    %228 = vmatmul.mubr.bf16.gmra.mxu0 %v132
    %v229 = vpop.f32.mrf.mxu0
    %v230 = vadd.f32 0.0, %v229
    %v231 = vpop.f32.mrf.mxu0
    %v232 = vpop.f32.mrf.mxu0
    %v233 = vadd.f32 0.0, %v232
    %v234 = vpop.f32.mrf.mxu0
    %235 = vmatprep.mubr.bf16.mxu0 0
    %236 = vmatmul.mubr.bf16.gmra.mxu0 %v133
    %v237 = vpop.f32.mrf.mxu0
    %v238 = vadd.f32 0.0, %v237
    %v239 = vpop.f32.mrf.mxu0
    %v240 = vpop.f32.mrf.mxu0
    %v241 = vadd.f32 0.0, %v240
    %v242 = vpop.f32.mrf.mxu0
    %243 = vmatprep.mubr.bf16.mxu0 0
    %244 = vmatmul.mubr.bf16.gmra.mxu0 %v134
    %v245 = vpop.f32.mrf.mxu0
    %v246 = vadd.f32 0.0, %v245
    %v247 = vpop.f32.mrf.mxu0
    %v248 = vpop.f32.mrf.mxu0
    %v249 = vadd.f32 0.0, %v248
    %v250 = vpop.f32.mrf.mxu0
    %251 = vdwg.mxu0
    %v252 = vld [vmem:[#allocation2] sm:$0xff]
    %v253 = vld [vmem:[#allocation2 + $0x8] sm:$0xff]
    %v254 = vld [vmem:[#allocation2 + $0x10] sm:$0xff]
    %v255 = vld [vmem:[#allocation2 + $0x18] sm:$0xff]
    %v256 = vld [vmem:[#allocation3] sm:$0xf]
    %v257 = vld [vmem:[#allocation3 + $0x4] sm:$0xf]
    %v258 = vld [vmem:[#allocation3 + $0x8] sm:$0xf]
    %v259 = vld [vmem:[#allocation3 + $0xc] sm:$0xf]
    %v260 = vpack.c.bf16 %v225, %v222
    %v261 = vpack.c.bf16 %v233, %v230
    %v262 = vpack.c.bf16 %v241, %v238
    %v263 = vpack.c.bf16 %v249, %v246
    %v268 = vunpack.c.l.b16 %v256
    %v269 = vunpack.c.l.b16 %v257
    %v270 = vunpack.c.l.b16 %v258
    %v271 = vunpack.c.l.b16 %v259
    %v272 = vpack.c.b16 %v269, %v268
    %v273 = vpack.c.b16 %v271, %v270
    %vm274 = vcmask 523264
    %v276 = vsel %vm274, %v272, 0
    %v279 = vsel %vm274, %v273, 0
    %281 = vmatprep.subr.bf16.mxu0 0
    %282 = vmatpush1.bf16.msra.mxu0 0
    %283 = vmatprep.subr.bf16.mxu0 0
    %284 = vmatpush1.bf16.msra.mxu0 0
    %285 = vmatprep.subr.bf16.mxu0 0
    %286 = vmatpush1.bf16.msra.mxu0 0
    %287 = vmatprep.subr.bf16.mxu0 0
    %288 = vmatpush1.bf16.msra.mxu0 0
    %289 = vmatprep.subr.bf16.mxu0 0
    %290 = vmatpush1.bf16.msra.mxu0 %v263
    %291 = vmatprep.subr.bf16.mxu0 0
    %292 = vmatpush1.bf16.msra.mxu0 %v262
    %293 = vmatprep.subr.bf16.mxu0 0
    %294 = vmatpush1.bf16.msra.mxu0 %v261
    %295 = vmatprep.subr.bf16.mxu0 0
    %296 = vmatpush1.bf16.msra.mxu0 %v260
    %297 = vmatprep.subr.bf16.mxu0 0
    %298 = vmatpush2.bf16.msra.mxu0 0
    %299 = vmatprep.subr.bf16.mxu0 0
    %300 = vmatpush2.bf16.msra.mxu0 0
    %301 = vmatprep.subr.bf16.mxu0 0
    %302 = vmatpush2.bf16.msra.mxu0 0
    %303 = vmatprep.subr.bf16.mxu0 0
    %304 = vmatpush2.bf16.msra.mxu0 0
    %305 = vmatprep.subr.bf16.mxu0 0
    %306 = vmatpush2.bf16.msra.mxu0 0
    %307 = vmatprep.subr.bf16.mxu0 0
    %308 = vmatpush2.bf16.msra.mxu0 0
    %309 = vmatprep.subr.bf16.mxu0 0
    %310 = vmatpush2.bf16.msra.mxu0 0
    %311 = vmatprep.subr.bf16.mxu0 0
    %312 = vmatpush2.bf16.msra.mxu0 0
    %313 = vmatprep.mubr.bf16.mxu0 0
    %314 = vmatmul.mubr.bf16.gmra.mxu0 %v276
    %v315 = vpop.f32.mrf.mxu0
    %v316 = vadd.f32 0.0, %v315
    %v317 = vpop.f32.mrf.mxu0
    %v318 = vpop.f32.mrf.mxu0
    %v319 = vadd.f32 0.0, %v318
    %v320 = vpop.f32.mrf.mxu0
    %321 = vmatprep.mubr.bf16.mxu0 0
    %322 = vmatmul.mubr.bf16.gmra.mxu0 %v279
    %v323 = vpop.f32.mrf.mxu0
    %v324 = vadd.f32 0.0, %v323
    %v325 = vpop.f32.mrf.mxu0
    %v326 = vpop.f32.mrf.mxu0
    %v327 = vadd.f32 0.0, %v326
    %v328 = vpop.f32.mrf.mxu0
    %329 = vdwg.mxu0
    %v330 = vadd.f32 %v252, %v316
    %v331 = vadd.f32 %v253, %v319
    %v332 = vadd.f32 %v254, %v324
    %v333 = vadd.f32 %v255, %v327
    %334 = vst [vmem:[#allocation2] sm:$0xff] %v330
    %335 = vst [vmem:[#allocation2 + $0x8] sm:$0xff] %v331
    %336 = vst [vmem:[#allocation2 + $0x10] sm:$0xff] %v332
    %337 = vst [vmem:[#allocation2 + $0x18] sm:$0xff] %v333
    // Predicated region
    $region50: #{tpu_custom_call.1} parent=1 // pred_check
      %p338 = pneg %p83
    $region51: #{tpu_custom_call.1} parent=1 // pred_check_branch
      %340 = sbr.rel (%p338) target = $region53
    $region52: #{tpu_custom_call.1} parent=1 // pred_region
      %v341 = vld [vmem:[#allocation2] sm:$0xff]
      %v342 = vld [vmem:[#allocation2 + $0x8] sm:$0xff]
      %v343 = vld [vmem:[#allocation2 + $0x10] sm:$0xff]
      %v344 = vld [vmem:[#allocation2 + $0x18] sm:$0xff]
      %v345 = vld [vmem:[%s3] sm:$0xff]
      %v346 = vld [vmem:[%s3 + $0x8] sm:$0xff]
      %v347 = vld [vmem:[%s3 + $0x10] sm:$0xff]
      %v348 = vld [vmem:[%s3 + $0x18] sm:$0xff]
      %350 = vset.pattern.permute.xlu0 0
      %351 = vperm.xlu0 %350, %v345
      %v352 = vpop.permute.xlu0 %351
      %355 = vset.pattern.permute.xlu0 0
      %356 = vperm.xlu0 %355, %v346
      %v357 = vpop.permute.xlu0 %356
      %360 = vset.pattern.permute.xlu0 0
      %361 = vperm.xlu0 %360, %v347
      %v362 = vpop.permute.xlu0 %361
      %365 = vset.pattern.permute.xlu0 0
      %366 = vperm.xlu0 %365, %v348
      %v367 = vpop.permute.xlu0 %366
      %v369 = vmul.f32 %v341, %v352
      %v370 = vmul.f32 %v342, %v357
      %v371 = vmul.f32 %v343, %v362
      %v372 = vmul.f32 %v344, %v367
      %v373 = vld [vmem:[#allocation6] sm:$0xf]
      %v374 = vld [vmem:[#allocation6 + $0x4] sm:$0xf]
      %v375 = vld [vmem:[#allocation6 + $0x8] sm:$0xf]
      %v376 = vld [vmem:[#allocation6 + $0xc] sm:$0xf]
      %v377 = vld [vmem:[#allocation9] sm:$0xf]
      %v378 = vld [vmem:[#allocation9 + $0x4] sm:$0xf]
      %v379 = vld [vmem:[#allocation9 + $0x8] sm:$0xf]
      %v380 = vld [vmem:[#allocation9 + $0xc] sm:$0xf]
      %v381 = vld [vmem:[#allocation9 + $0x10] sm:$0xf]
      %v382 = vld [vmem:[#allocation9 + $0x14] sm:$0xf]
      %v383 = vld [vmem:[#allocation9 + $0x18] sm:$0xf]
      %v384 = vld [vmem:[#allocation9 + $0x1c] sm:$0xf]
      %v385 = vld [vmem:[#allocation9 + $0x20] sm:$0xf]
      %v386 = vld [vmem:[#allocation9 + $0x24] sm:$0xf]
      %v387 = vld [vmem:[#allocation9 + $0x28] sm:$0xf]
      %v388 = vld [vmem:[#allocation9 + $0x2c] sm:$0xf]
      %v389 = vld [vmem:[#allocation9 + $0x30] sm:$0xf]
      %v390 = vld [vmem:[#allocation9 + $0x34] sm:$0xf]
      %v391 = vld [vmem:[#allocation9 + $0x38] sm:$0xf]
      %v392 = vld [vmem:[#allocation9 + $0x3c] sm:$0xf]
      %v397 = vunpack.c.l.b16 %v373
      %v398 = vunpack.c.l.b16 %v374
      %v399 = vunpack.c.l.b16 %v375
      %v400 = vunpack.c.l.b16 %v376
      %v401 = vpack.c.b16 %v398, %v397
      %v402 = vpack.c.b16 %v400, %v399
      %v421 = vunpack.c.l.b16 %v377
      %v422 = vunpack.c.l.b16 %v378
      %v423 = vunpack.c.l.b16 %v379
      %v424 = vunpack.c.l.b16 %v380
      %v425 = vunpack.c.l.b16 %v381
      %v426 = vunpack.c.l.b16 %v382
      %v427 = vunpack.c.l.b16 %v383
      %v428 = vunpack.c.l.b16 %v384
      %v429 = vunpack.c.l.b16 %v385
      %v430 = vunpack.c.l.b16 %v386
      %v431 = vunpack.c.l.b16 %v387
      %v432 = vunpack.c.l.b16 %v388
      %v433 = vunpack.c.l.b16 %v389
      %v434 = vunpack.c.l.b16 %v390
      %v435 = vunpack.c.l.b16 %v391
      %v436 = vunpack.c.l.b16 %v392
      %v437 = vpack.c.b16 %v422, %v421
      %v438 = vpack.c.b16 %v424, %v423
      %v439 = vpack.c.b16 %v426, %v425
      %v440 = vpack.c.b16 %v428, %v427
      %v441 = vpack.c.b16 %v430, %v429
      %v442 = vpack.c.b16 %v432, %v431
      %v443 = vpack.c.b16 %v434, %v433
      %v444 = vpack.c.b16 %v436, %v435
      %453 = vmatprep.subr.bf16.mxu0 0
      %454 = vmatpush1.bf16.msra.mxu0 %v444
      %455 = vmatprep.subr.bf16.mxu0 0
      %456 = vmatpush1.bf16.msra.mxu0 %v443
      %457 = vmatprep.subr.bf16.mxu0 0
      %458 = vmatpush1.bf16.msra.mxu0 %v442
      %459 = vmatprep.subr.bf16.mxu0 0
      %460 = vmatpush1.bf16.msra.mxu0 %v441
      %461 = vmatprep.subr.bf16.mxu0 0
      %462 = vmatpush1.bf16.msra.mxu0 %v440
      %463 = vmatprep.subr.bf16.mxu0 0
      %464 = vmatpush1.bf16.msra.mxu0 %v439
      %465 = vmatprep.subr.bf16.mxu0 0
      %466 = vmatpush1.bf16.msra.mxu0 %v438
      %467 = vmatprep.subr.bf16.mxu0 0
      %468 = vmatpush1.bf16.msra.mxu0 %v437
      %469 = vmatprep.subr.bf16.mxu0 0
      %470 = vmatpush2.bf16.msra.mxu0 0
      %471 = vmatprep.subr.bf16.mxu0 0
      %472 = vmatpush2.bf16.msra.mxu0 0
      %473 = vmatprep.subr.bf16.mxu0 0
      %474 = vmatpush2.bf16.msra.mxu0 0
      %475 = vmatprep.subr.bf16.mxu0 0
      %476 = vmatpush2.bf16.msra.mxu0 0
      %477 = vmatprep.subr.bf16.mxu0 0
      %478 = vmatpush2.bf16.msra.mxu0 0
      %479 = vmatprep.subr.bf16.mxu0 0
      %480 = vmatpush2.bf16.msra.mxu0 0
      %481 = vmatprep.subr.bf16.mxu0 0
      %482 = vmatpush2.bf16.msra.mxu0 0
      %483 = vmatprep.subr.bf16.mxu0 0
      %484 = vmatpush2.bf16.msra.mxu0 0
      %485 = vmatprep.mubr.bf16.mxu0 0
      %486 = vmatmul.mubr.bf16.gmra.mxu0 %v401
      %v487 = vpop.f32.mrf.mxu0
      %v488 = vadd.f32 0.0, %v487
      %v489 = vpop.f32.mrf.mxu0
      %v490 = vpop.f32.mrf.mxu0
      %v491 = vadd.f32 0.0, %v490
      %v492 = vpop.f32.mrf.mxu0
      %493 = vmatprep.mubr.bf16.mxu0 0
      %494 = vmatmul.mubr.bf16.gmra.mxu0 %v402
      %v495 = vpop.f32.mrf.mxu0
      %v496 = vadd.f32 0.0, %v495
      %v497 = vpop.f32.mrf.mxu0
      %v498 = vpop.f32.mrf.mxu0
      %v499 = vadd.f32 0.0, %v498
      %v500 = vpop.f32.mrf.mxu0
      %501 = vdwg.mxu0
      %v502 = vadd.f32 %v369, %v488
      %v503 = vadd.f32 %v370, %v491
      %v504 = vadd.f32 %v371, %v496
      %v505 = vadd.f32 %v372, %v499
      %v506 = vld [vmem:[%s6] sm:$0x1]
      %v508 = vlaneseq
      %v509 = vshrl.u32 %v508, 7
      %v510 = vsub.s32 0, %v509
      %v511 = vrot.slane %v506, %v510
      %v513 = vadd.f32 %v502, %v511
      %v514 = vadd.f32 %v503, %v511
      %v515 = vadd.f32 %v504, %v511
      %v516 = vadd.f32 %v505, %v511
      %v517 = vmax.f32 %v513, 0.0
      %v518 = vmax.f32 %v514, 0.0
      %v519 = vmax.f32 %v515, 0.0
      %v520 = vmax.f32 %v516, 0.0
      %v521 = vpack.c.bf16 %v518, %v517
      %v522 = vpack.c.bf16 %v520, %v519
      %v525 = vunpack.c.l.b16 %v521
      %v526 = vunpack.c.h.b16 %v521
      %v527 = vunpack.c.l.b16 %v522
      %v528 = vunpack.c.h.b16 %v522
      %v529 = vpack.c.b16 %v525, %v525
      %v530 = vpack.c.b16 %v526, %v526
      %v531 = vpack.c.b16 %v527, %v527
      %v532 = vpack.c.b16 %v528, %v528
      %537 = vst [vmem:[#allocation11] sm:$0xf] %v529
      %538 = vst [vmem:[#allocation11 + $0x4] sm:$0xf] %v530
      %539 = vst [vmem:[#allocation11 + $0x8] sm:$0xf] %v531
      %540 = vst [vmem:[#allocation11 + $0xc] sm:$0xf] %v532
    $region53: #{tpu_custom_call.1} parent=1 // pred_fallthru
      _
    // Predicated region
    $region54: #{tpu_custom_call.1} parent=1 // pred_check
      _
    $region55: #{tpu_custom_call.1} parent=1 // pred_check_branch
      %542 = sbr.rel (0) target = $region57
    $region56: #{tpu_custom_call.1} parent=1 // pred_region
      %s544 = ssub.s32 256, 256
      %545 = vsyncadd [#allocation5], %s544
      %s546 = sshll.u32 [#allocation11], 4
      %s547 = int_to_ptr.vmem [resolvable:$true] %s546
      %552 = dma.vmem_to_hbm [thread:$0]  %s547, 256, %s7, [#allocation5], 64, 64, 4
    $region57: #{tpu_custom_call.1} parent=1 // pred_fallthru
      _
    // Predicated region
    $region58: #{tpu_custom_call.1} parent=1 // pred_check
      _
    $region59: #{tpu_custom_call.1} parent=1 // pred_check_branch
      %554 = sbr.rel (0) target = $region61
    $region60: #{tpu_custom_call.1} parent=1 // pred_region
      %555 = dma.done [#allocation5], 256
    $region61: #{tpu_custom_call.1} parent=1 // pred_fallthru
      _
    %556 = vsyncpa [#allocation4], 1
    %557 = vsyncpa [#allocation7], 1
    %558 = vsyncpa [#allocation10], 1
    %559 = vsyncpa [#allocation5], 1

</llo_original>
